<compile_context>
chip_gen: v5e
topology: v5e:2x2
jax: 0.10.0
libtpu: 0.0.40
codegen_flags: <defaults>
</compile_context>

<pallas_src>
import functools

import jax
import jax.numpy as jnp
from jax.experimental import pallas as pl
from jax.experimental.pallas import tpu as pltpu

LANE = 128
SUBLANE = 8
NEG_BIG = jnp.float32(-1e30)  # masks padded classes out of the softmax (f32 only)


def linear_eval_kernel(x_ref, w_ref, b_ref, o_ref):
    # x_ref: (TB, f_dim), w_ref: (f_dim, C_pad), b_ref: (1, C_pad)
    logits = jnp.dot(x_ref[...], w_ref[...], preferred_element_type=jnp.float32)
    logits = logits + b_ref[...]                 # padded cols -> ~-1e30
    # numerically stable softmax along axis=1 (padded cols: exp underflows to 0)
    m = jnp.max(logits, axis=1, keepdims=True)
    e = jnp.exp(logits - m)
    denom = jnp.sum(e, axis=1, keepdims=True)
    # exact divide: approx reciprocal's relative error can push row sums
    # outside the 1e-5 tolerance.
    o_ref[...] = (e / denom).astype(o_ref.dtype)


def pad_params(w, b, num_class):
    """Pad class (lane) dim to a multiple of 128.  Call ONCE at weight-load time."""
    f_dim = w.shape[0]
    c_pad = pl.cdiv(num_class, LANE) * LANE
    w_p = jnp.zeros((f_dim, c_pad), jnp.float32).at[:, :num_class].set(
        w.astype(jnp.float32))
    b_p = jnp.full((1, c_pad), NEG_BIG, jnp.float32).at[:, :num_class].set(
        b.reshape(1, num_class).astype(jnp.float32))
    return w_p, b_p


def _pick_block_b(B, cap=2048):
    """Batch tile: sublane multiple, >= 2 grid steps when possible (v7x megacore)."""
    if B <= SUBLANE:
        return B
    half = pl.cdiv(pl.cdiv(B, 2), SUBLANE) * SUBLANE   # round8(ceil(B/2))
    return min(cap, half)


@functools.partial(jax.jit, static_argnames=("num_class", "block_b"))
def linear_eval_forward(x, w_p, b_p, num_class, block_b=None):
    """softmax(x @ W + b, axis=1).  w_p/b_p are the lane-padded params."""
    B, f_dim = x.shape
    c_pad = w_p.shape[-1]
    if block_b is None:
        block_b = _pick_block_b(B)
    nb = pl.cdiv(B, block_b)   # non-divisible grid: Pallas clamps the last block

    # advisory cost hint for XLA's scheduler around this tiny custom call
    flops = 2 * B * f_dim * c_pad + 5 * B * c_pad
    bytes_accessed = 4 * (x.size + w_p.size + b_p.size + B * c_pad)
    ce = pl.CostEstimate(flops=flops,
                         transcendentals=B * c_pad,
                         bytes_accessed=bytes_accessed)

    out = pl.pallas_call(
        linear_eval_kernel,
        out_shape=jax.ShapeDtypeStruct((B, c_pad), jnp.float32),
        grid_spec=pl.GridSpec(
            grid=(nb,),
            in_specs=[
                pl.BlockSpec((block_b, f_dim), lambda i: (i, 0)),   # x tile
                pl.BlockSpec((f_dim, c_pad), lambda i: (0, 0)),     # W resident
                pl.BlockSpec((1, c_pad), lambda i: (0, 0)),         # b resident
            ],
            out_specs=pl.BlockSpec((block_b, c_pad), lambda i: (i, 0)),
        ),
        compiler_params=pltpu.CompilerParams(
            dimension_semantics=("parallel",),
        ),
        cost_estimate=ce,
    )(x, w_p, b_p)

    # class slice stays under this jit so XLA can fuse it; no batch slice needed
    return out[:, :num_class]


if __name__ == "__main__":
    # Small shapes implied by the module: batch=8 feature vectors of f_dim=32,
    # num_class=10.
    B, f_dim, num_class = 8, 32, 10

    key = jax.random.PRNGKey(0)
    kx, kw, kb = jax.random.split(key, 3)

    x = jax.random.normal(kx, (B, f_dim), dtype=jnp.float32)

    # Deterministic init mirroring nn.Linear default: U(-1/sqrt(f_dim), 1/sqrt(f_dim))
    bound = 1.0 / (f_dim ** 0.5)
    w = jax.random.uniform(kw, (f_dim, num_class), jnp.float32, -bound, bound)
    b = jax.random.uniform(kb, (1, num_class), jnp.float32, -bound, bound)

    # pad params once (weight-load time), reuse across eval batches
    w_p, b_p = pad_params(w, b, num_class)

    out = linear_eval_forward(x, w_p, b_p, num_class)
    out = jax.block_until_ready(out)

    # sanity: softmax rows sum to 1 and match the pure-JAX reference
    ref = jax.nn.softmax(x @ w + b, axis=1)
    assert out.shape == (B, num_class)
    assert jnp.allclose(jnp.sum(out, axis=1), 1.0, atol=1e-5)
    assert jnp.allclose(out, ref, atol=1e-5)

    print("KERNEL_OK")
</pallas_src>

<mosaic_0001>
module attributes {stable_mosaic.version = 11 : i64} {
  func.func @linear_eval_kernel(%arg0: i32, %arg1: memref<8x32xf32, #tpu.memory_space<vmem>>, %arg2: memref<32x128xf32, #tpu.memory_space<vmem>>, %arg3: memref<1x128xf32, #tpu.memory_space<vmem>>, %arg4: memref<8x128xf32, #tpu.memory_space<vmem>>) attributes {dimension_semantics = [#tpu.dimension_semantics<parallel>], iteration_bounds = array<i64: 1>, scalar_prefetch = 0 : i64, scratch_operands = 0 : i64, tpu.core_type = #tpu.core_type<tc>, window_params = [{transform_indices = @transform_0, window_bounds = array<i64: 8, 32>}, {pipeline_mode = #tpu.pipeline_mode<synchronous>, transform_indices = @transform_1, window_bounds = array<i64: 32, 128>}, {pipeline_mode = #tpu.pipeline_mode<synchronous>, transform_indices = @transform_2, window_bounds = array<i64: 1, 128>}, {transform_indices = @transform_3, window_bounds = array<i64: 8, 128>}]} {
    %c0 = arith.constant 0 : index
    %c0_0 = arith.constant 0 : index
    %0 = vector.load %arg1[%c0, %c0_0] : memref<8x32xf32, #tpu.memory_space<vmem>>, vector<8x32xf32>
    %c0_1 = arith.constant 0 : index
    %c0_2 = arith.constant 0 : index
    %1 = vector.load %arg2[%c0_1, %c0_2] : memref<32x128xf32, #tpu.memory_space<vmem>>, vector<32x128xf32>
    %cst = arith.constant dense<0.000000e+00> : vector<8x128xf32>
    %2 = tpu.matmul %0, %1, %cst {dimension_numbers = #tpu.dot_dimension_numbers<[1], [0], [0], [1], [0, 0, 1, 1], [], []>} : vector<8x32xf32>, vector<32x128xf32>, vector<8x128xf32> -> vector<8x128xf32>
    %c0_3 = arith.constant 0 : index
    %c0_4 = arith.constant 0 : index
    %3 = vector.load %arg3[%c0_3, %c0_4] : memref<1x128xf32, #tpu.memory_space<vmem>>, vector<1x128xf32>
    %4 = vector.broadcast %3 : vector<1x128xf32> to vector<8x128xf32>
    %5 = arith.addf %2, %4 : vector<8x128xf32>
    %cst_5 = arith.constant dense<0xFF800000> : vector<8xf32>
    %6 = vector.multi_reduction <maximumf>, %5, %cst_5 [1] : vector<8x128xf32> to vector<8xf32>
    %7 = vector.shape_cast %6 : vector<8xf32> to vector<8x1xf32>
    %8 = vector.broadcast %7 : vector<8x1xf32> to vector<8x128xf32>
    %9 = arith.subf %5, %8 : vector<8x128xf32>
    %10 = math.exp %9 : vector<8x128xf32>
    %cst_6 = arith.constant dense<0.000000e+00> : vector<8xf32>
    %11 = vector.multi_reduction <add>, %10, %cst_6 [1] : vector<8x128xf32> to vector<8xf32>
    %12 = vector.shape_cast %11 : vector<8xf32> to vector<8x1xf32>
    %13 = vector.broadcast %12 : vector<8x1xf32> to vector<8x128xf32>
    %14 = arith.divf %10, %13 : vector<8x128xf32>
    %c0_7 = arith.constant 0 : index
    %c0_8 = arith.constant 0 : index
    %15 = vector.load %arg4[%c0_7, %c0_8] : memref<8x128xf32, #tpu.memory_space<vmem>>, vector<8x128xf32>
    tpu.vector_store %arg4[%c0_7, %c0_8], %14 {strides = array<i32>} : memref<8x128xf32, #tpu.memory_space<vmem>>, vector<8x128xf32>,
    return
  }
  func.func @transform_0(%arg0: i32) -> (i32, i32) {
    %c0_i32 = arith.constant 0 : i32
    %c0_i32_0 = arith.constant 0 : i32
    return %arg0, %c0_i32 : i32, i32
  }
  func.func @transform_1(%arg0: i32) -> (i32, i32) {
    %c0_i32 = arith.constant 0 : i32
    %c0_i32_0 = arith.constant 0 : i32
    %c0_i32_1 = arith.constant 0 : i32
    return %c0_i32, %c0_i32_0 : i32, i32
  }
  func.func @transform_2(%arg0: i32) -> (i32, i32) {
    %c0_i32 = arith.constant 0 : i32
    %c0_i32_0 = arith.constant 0 : i32
    %c0_i32_1 = arith.constant 0 : i32
    return %c0_i32, %c0_i32_0 : i32, i32
  }
  func.func @transform_3(%arg0: i32) -> (i32, i32) {
    %c0_i32 = arith.constant 0 : i32
    %c0_i32_0 = arith.constant 0 : i32
    return %arg0, %c0_i32 : i32, i32
  }
}

</mosaic_0001>

<llo_original>
// kernel: linear_eval_forward.1
$region0: #{linear_eval_forward.1}
  #allocation0 [shape = 'u32[]', space=smem, size = 0x4, offset = 0x4, fixed_abs, tag = 'smem constant byte address 0x4 - core index']
  #allocation1 [shape = 'u32[72,128]{1,0:T(1,128)}', space=vmem, size = 0x9000, scoped, tag = 'internal scratch']
  %s0 = inlined_call_operand.hbm [shape: f32[8,32], index: 0, kind: input, shape index: {}]
  %s1 = inlined_call_operand.hbm [shape: f32[32,128], index: 1, kind: input, shape index: {}]
  %s2 = inlined_call_operand.vmem [shape: f32[1,128], index: 2, kind: input, shape index: {}]
  %s3 = inlined_call_operand.hbm [shape: f32[8,128], index: 3, kind: output, shape index: {}]
  %s4 = sld [smem:[#allocation0]]
  $region30: #{linear_eval_forward.1} parent=0
    _
  %s6 = ssub.s32 1, %s4
  %s7 = scalar_select 0, %s6, %s4
  $region1: #{linear_eval_forward.1} parent=0
    #allocation2 [shape = 'u8[4096]{0}', space=vmem, size = 0x1000, scoped, tag = 'input window, operand 0, single buffered']
    #allocation3 [shape = 's32[1]{0}', space=sflag, size = 0x4, scoped, tag = 'scoped memory for linear_eval_forward.1']
    #allocation4 [shape = 's32[1]{0}', space=sflag, size = 0x4, scoped, tag = 'scoped memory for linear_eval_forward.1']
    #allocation5 [shape = 'u8[16384]{0}', space=vmem, size = 0x4000, scoped, tag = 'input window, operand 1, single buffered']
    #allocation6 [shape = 's32[1]{0}', space=sflag, size = 0x4, scoped, tag = 'scoped memory for linear_eval_forward.1']
    #allocation7 [shape = 'u8[4096]{0}', space=vmem, size = 0x1000, scoped, tag = 'output window, operand 0, single buffered']
    %8 = vsyncpa [#allocation3], 0
    %9 = vsyncpa [#allocation6], 0
    %10 = vsyncpa [#allocation4], 0
    // Predicated region
    $region2: #{linear_eval_forward.1} parent=1 // pred_check
      _
    $region3: #{linear_eval_forward.1} parent=1 // pred_check_branch
      %12 = sbr.rel (0) target = $region5
    $region4: #{linear_eval_forward.1} parent=1 // pred_region
      %14 = vsyncadd [#allocation3], 0
      %s16 = sshll.u32 %s0, 4
      %s17 = int_to_ptr.hbm [resolvable:$true] %s16
      %s18 = sshll.u32 [#allocation2], 4
      %s19 = int_to_ptr.vmem [resolvable:$true] %s18
      %21 = dma.hbm_to_vmem [thread:$0]  %s17, 128, %s19, [#allocation3]
    $region5: #{linear_eval_forward.1} parent=1 // pred_fallthru
      _
    // Predicated region
    $region6: #{linear_eval_forward.1} parent=1 // pred_check
      _
    $region7: #{linear_eval_forward.1} parent=1 // pred_check_branch
      %23 = sbr.rel (0) target = $region9
    $region8: #{linear_eval_forward.1} parent=1 // pred_region
      %25 = vsyncadd [#allocation6], 0
      %s26 = sshll.u32 %s1, 4
      %s27 = int_to_ptr.hbm [resolvable:$true] %s26
      %s28 = sshll.u32 [#allocation5], 4
      %s29 = int_to_ptr.vmem [resolvable:$true] %s28
      %34 = dma.hbm_to_vmem [thread:$0]  %s27, 512, %s29, [#allocation6], 128, 128, 8
    $region9: #{linear_eval_forward.1} parent=1 // pred_fallthru
      _
    // Predicated region
    $region10: #{linear_eval_forward.1} parent=1 // pred_check
      _
    $region11: #{linear_eval_forward.1} parent=1 // pred_check_branch
      %36 = sbr.rel (0) target = $region13
    $region12: #{linear_eval_forward.1} parent=1 // pred_region
      _
    $region13: #{linear_eval_forward.1} parent=1 // pred_fallthru
      _
    // Predicated region
    $region14: #{linear_eval_forward.1} parent=1 // pred_check
      _
    $region15: #{linear_eval_forward.1} parent=1 // pred_check_branch
      %38 = sbr.rel (0) target = $region17
    $region16: #{linear_eval_forward.1} parent=1 // pred_region
      %40 = dma.done [#allocation3], 128
    $region17: #{linear_eval_forward.1} parent=1 // pred_fallthru
      _
    // Predicated region
    $region18: #{linear_eval_forward.1} parent=1 // pred_check
      _
    $region19: #{linear_eval_forward.1} parent=1 // pred_check_branch
      %42 = sbr.rel (0) target = $region21
    $region20: #{linear_eval_forward.1} parent=1 // pred_region
      %44 = dma.done [#allocation6], 512
    $region21: #{linear_eval_forward.1} parent=1 // pred_fallthru
      _
    %v45 = vld [vmem:[#allocation2] sm:$0xff]
    %v46 = vld [vmem:[#allocation5] sm:$0xff]
    %v47 = vld [vmem:[#allocation5 + $0x8] sm:$0xff]
    %v48 = vld [vmem:[#allocation5 + $0x10] sm:$0xff]
    %v49 = vld [vmem:[#allocation5 + $0x18] sm:$0xff]
    %v50 = vld [vmem:[%s2] sm:$0x1]
    %v52 = vperm.slane %v50, 0
    %vm54 = vcmask 261120
    %v56 = vsel %vm54, %v45, 0
    %58 = vmatpush.msra.mxu0 0.0
    %59 = vmatpush.msra.mxu0 0.0
    %60 = vmatpush.msra.mxu0 0.0
    %61 = vmatpush.msra.mxu0 0.0
    %62 = vmatpush.msra.mxu0 0.0
    %63 = vmatpush.msra.mxu0 0.0
    %64 = vmatpush.msra.mxu0 0.0
    %65 = vmatpush.msra.mxu0 0.0
    %66 = vmatpush.msra.mxu0 0.0
    %67 = vmatpush.msra.mxu0 0.0
    %68 = vmatpush.msra.mxu0 0.0
    %69 = vmatpush.msra.mxu0 0.0
    %70 = vmatpush.msra.mxu0 %v49
    %71 = vmatpush.msra.mxu0 %v48
    %72 = vmatpush.msra.mxu0 %v47
    %73 = vmatpush.msra.mxu0 %v46
    %74 = vmatmul.f32.gmra.mxu0 %v56
    %v75 = vpop.f32.mrf.mxu0
    %v76 = vadd.f32 %v52, %v75
    %77 = vdwg.mxu0
    %78 = vmax.xlane.f32.xlu0 %v76
    %v79 = vpop.xlane.xlu0 %78
    %v80 = vsub.f32 %v76, %v79
    %v81 = vmul.f32 %v80, 1.442695
    %v82 = vpow.pop %v81
    %83 = vadd.xlane.f32.xlu0 %v82
    %v84 = vpop.xlane.xlu0 %83
    %v85 = vrcp.pop %v84
    %v86 = vmul.f32 %v84, %v85
    %v87 = vsub.f32 1.0, %v86
    %v88 = vmul.f32 %v85, %v87
    %v89 = vadd.f32 %v85, %v88
    %vm90 = vweird.f32 %v84
    %vm91 = vweird.f32 %v85
    %vm92 = vmor %vm90, %vm91
    %v93 = vsel %vm92, %v85, %v89
    %v94 = vand.u32 2147483647, %v84
    %vm95 = vcmp.eq.f32.partialorder %v94, 8.507059e+37
    %v96 = vand.u32 %v84, 2147483648
    %v97 = vor.u32 1.1754944e-38, %v96
    %v98 = vsel %vm95, %v97, %v93
    %v99 = vmul.f32 %v82, %v98
    %100 = vst [vmem:[#allocation7] sm:$0xff] %v99
    // Predicated region
    $region22: #{linear_eval_forward.1} parent=1 // pred_check
      _
    $region23: #{linear_eval_forward.1} parent=1 // pred_check_branch
      %102 = sbr.rel (0) target = $region25
    $region24: #{linear_eval_forward.1} parent=1 // pred_region
      %104 = vsyncadd [#allocation4], 0
      %s106 = sshll.u32 [#allocation7], 4
      %s107 = int_to_ptr.vmem [resolvable:$true] %s106
      %s108 = sshll.u32 %s3, 4
      %s109 = int_to_ptr.hbm [resolvable:$true] %s108
      %111 = dma.vmem_to_hbm [thread:$0]  %s107, 128, %s109, [#allocation4]
    $region25: #{linear_eval_forward.1} parent=1 // pred_fallthru
      _
    // Predicated region
    $region26: #{linear_eval_forward.1} parent=1 // pred_check
      _
    $region27: #{linear_eval_forward.1} parent=1 // pred_check_branch
      %113 = sbr.rel (0) target = $region29
    $region28: #{linear_eval_forward.1} parent=1 // pred_region
      %115 = dma.done [#allocation4], 128
    $region29: #{linear_eval_forward.1} parent=1 // pred_fallthru
      _
    %116 = vsyncpa [#allocation3], 1
    %117 = vsyncpa [#allocation6], 1
    %118 = vsyncpa [#allocation4], 1

</llo_original>
